<compile_context>
chip_gen: v7x
topology: tpu7x:2x2x1
jax: 0.10.0
libtpu: 0.0.40
codegen_flags: <defaults>
</compile_context>

<pallas_src>
import functools

import jax
import jax.numpy as jnp
from jax.experimental import pallas as pl
from jax.experimental.pallas import tpu as pltpu


# ---------------------------------------------------------------------------
# Kernels
# ---------------------------------------------------------------------------

def _linear_relu_resident_kernel(x_ref, w_ref, b_ref, o_ref):
    # x_ref: (tm, K) activations (HBM dtype; cast to the matmul dtype in-kernel)
    # w_ref: (K, N)  pre-transposed weight, resident in VMEM (constant index map)
    # b_ref: (1, N)  f32 bias
    # o_ref: (tm, N) output tile
    x = x_ref[...].astype(w_ref.dtype)
    acc = jnp.dot(x, w_ref[...], preferred_element_type=jnp.float32)
    acc = acc + b_ref[...]
    o_ref[...] = jnp.maximum(acc, 0.0).astype(o_ref.dtype)


def _linear_relu_tiled_kernel(x_ref, w_ref, b_ref, o_ref, acc_ref):
    # x_ref: (tm, tk); w_ref: (tk, tn); b_ref: (1, tn); o_ref: (tm, tn)
    # acc_ref: (tm, tn) f32 scratch, persists across the (arbitrary) K axis.
    k = pl.program_id(2)
    x = x_ref[...].astype(w_ref.dtype)
    partial = jnp.dot(x, w_ref[...], preferred_element_type=jnp.float32)

    @pl.when(k == 0)
    def _init():
        # Direct assign: skips the zero-store + reload of the accumulator.
        acc_ref[...] = partial

    @pl.when(k > 0)
    def _accumulate():
        acc_ref[...] += partial

    @pl.when(k == pl.num_programs(2) - 1)
    def _finalize():
        out = acc_ref[...] + b_ref[...]
        o_ref[...] = jnp.maximum(out, 0.0).astype(o_ref.dtype)


# ---------------------------------------------------------------------------
# Tiling helpers
# ---------------------------------------------------------------------------

def _round_up(x, m):
    return ((x + m - 1) // m) * m


_VMEM_CAPACITY_CACHE = [None]


def _vmem_capacity_bytes():
    if _VMEM_CAPACITY_CACHE[0] is None:
        try:
            _VMEM_CAPACITY_CACHE[0] = int(pltpu.get_tpu_info().vmem_capacity_bytes)
        except Exception:
            _VMEM_CAPACITY_CACHE[0] = 128 << 20  # v5e/v6e physical VMEM
    return _VMEM_CAPACITY_CACHE[0]


def _pick_tile_m(B, block_b, row_mult):
    tm = 512 if block_b is None else int(block_b)
    tm = _round_up(tm, row_mult)
    return B if tm >= B else tm


def _pick_tile_n(N, block_n):
    tn = 512 if block_n is None else int(block_n)
    if tn >= N:
        return N
    # 256-multiples drive the 2x256x256 MXU (v6e/v7x) at full width; also fine
    # on v5e's 128-wide MXU.
    mult = 256 if N >= 256 else 128
    tn = _round_up(tn, mult)
    return N if tn >= N else tn


def _pick_tile_k(K, block_k, strip_bytes_fn, budget):
    # Reduction axis: only exact divisors of K are accepted (a partial K block
    # would feed unmasked garbage into the accumulator).
    if block_k is not None:
        bk = int(block_k)
        if bk >= K:
            return K
        mult = 256 if K >= 256 else 128
        bk = _round_up(bk, mult)
        if bk < K and K % bk == 0:
            return bk
        return K
    if strip_bytes_fn(K) <= budget:
        return K  # whole-K strips fit: fewest accumulator writebacks
    for cand in (2048, 1024, 512, 256, 128):
        if cand < K and K % cand == 0 and strip_bytes_fn(cand) <= budget:
            return cand
    # TODO(synk): zero-pad K wrapper-side to a 256-multiple for huge, odd input_dim.
    return K


def _ensure_parallel_extent(B, tm, row_mult, other_extent):
    # v7x has two TensorCores: make sure at least one "parallel" grid axis has
    # extent >= 2 so megacore sharding has something to split.
    if other_extent >= 2 or pl.cdiv(B, tm) >= 2:
        return tm
    half = _round_up(pl.cdiv(B, 2), row_mult)
    if half < B:
        return half
    return tm


# ---------------------------------------------------------------------------
# Public API
# ---------------------------------------------------------------------------

def prepare_generic_processor_params(weight, bias, compute_dtype=jnp.bfloat16):
    """One-time parameter prep (cache the result across forward calls).

    weight: (emb_dim, input_dim) PyTorch layout -> transposed to (input_dim,
            emb_dim) and cast to the MXU matmul dtype (bf16 by default; pass
            jnp.float32 for a full-precision escape hatch).
    bias:   (emb_dim,) -> (1, emb_dim) float32 (bias add + ReLU always in f32).
    """
    w_t = jnp.asarray(weight).T.astype(compute_dtype)
    b2 = jnp.asarray(bias).astype(jnp.float32).reshape(1, -1)
    return w_t, b2


@functools.partial(jax.jit, static_argnames=("block_b", "block_n", "block_k"))
def generic_processor_forward(x, weight_t, bias2, *, block_b=None, block_n=None,
                              block_k=None):
    """Pallas equivalent of F.relu(nn.Linear(input_dim, emb_dim)(x)).

    x:        (B, input_dim)
    weight_t: (input_dim, emb_dim)  from prepare_generic_processor_params
    bias2:    (1, emb_dim) float32  from prepare_generic_processor_params

    The matmul runs in weight_t.dtype (x is cast in-kernel); accumulation,
    bias add and ReLU are always float32.  Returns (B, emb_dim) in x.dtype.
    """
    B, K = x.shape
    Kw, N = weight_t.shape
    assert K == Kw, (x.shape, weight_t.shape)
    assert bias2.shape == (1, N), bias2.shape

    out_dtype = x.dtype
    x_item = jnp.dtype(x.dtype).itemsize
    w_item = jnp.dtype(weight_t.dtype).itemsize
    out_item = jnp.dtype(out_dtype).itemsize

    # Sublane packing of the matmul dtype: f32 -> 8 rows, bf16 -> 16 rows.
    row_mult = max(8, 32 // max(w_item, 1))

    tm = _pick_tile_m(B, block_b, row_mult)
    # ~48 MiB on v7x (64 MiB/TC), ~96 MiB on v5e/v6e (128 MiB).
    budget = int(0.75 * _vmem_capacity_bytes())

    # ------------- Resident-weight fast path (1-D grid over batch) -------------
    resident_bytes = (2 * tm * K * x_item       # x double buffer
                      + 2 * K * N * w_item      # weight (conservatively x2)
                      + 2 * N * 4               # bias
                      + 2 * tm * N * out_item)  # output double buffer
    use_resident = (block_n is None and block_k is None
                    and resident_bytes <= budget // 2)

    if use_resident:
        tm = _ensure_parallel_extent(B, tm, row_mult, 1)
        grid = (pl.cdiv(B, tm),)
        needed = (2 * tm * K * x_item + 2 * K * N * w_item + 2 * N * 4
                  + 2 * tm * N * out_item)
        vmem_limit = int(min(budget, max(needed + (2 << 20), 32 << 20)))
        cost = pl.CostEstimate(
            flops=2 * B * K * N,
            transcendentals=0,
            bytes_accessed=(B * K * x_item + K * N * w_item + N * 4
                            + B * N * out_item),
        )
        return pl.pallas_call(
            _linear_relu_resident_kernel,
            out_shape=jax.ShapeDtypeStruct((B, N), out_dtype),
            grid_spec=pltpu.PrefetchScalarGridSpec(
                num_scalar_prefetch=0,
                grid=grid,
                in_specs=[
                    pl.BlockSpec((tm, K), lambda i: (i, 0)),   # x batch strip
                    pl.BlockSpec((K, N), lambda i: (0, 0)),    # weight: 1 DMA, resident
                    pl.BlockSpec((1, N), lambda i: (0, 0)),    # bias: resident
                ],
                out_specs=pl.BlockSpec((tm, N), lambda i: (i, 0)),
            ),
            compiler_params=pltpu.CompilerParams(
                dimension_semantics=("parallel",),
                vmem_limit_bytes=vmem_limit,
            ),
            cost_estimate=cost,
        )(x, weight_t, bias2)

    # -------------- Tiled (M, N, K) path with f32 accumulator ------------------
    tn = _pick_tile_n(N, block_n)

    def strip_bytes(tk):
        return (2 * tm * tk * x_item + 2 * tk * tn * w_item + 2 * tn * 4
                + 2 * tm * tn * out_item + tm * tn * 4)

    tk = _pick_tile_k(K, block_k, strip_bytes, budget)
    grid_n = pl.cdiv(N, tn)
    tm = _ensure_parallel_extent(B, tm, row_mult, grid_n)
    grid = (pl.cdiv(B, tm), grid_n, pl.cdiv(K, tk))

    needed = strip_bytes(tk)
    vmem_limit = int(min(budget, max(needed + (2 << 20), 32 << 20)))
    cost = pl.CostEstimate(
        flops=2 * B * K * N,
        transcendentals=0,
        # Weight is re-streamed once per batch tile with this grid ordering.
        bytes_accessed=(B * K * x_item + grid[0] * K * N * w_item + N * 4
                        + B * N * out_item),
    )
    return pl.pallas_call(
        _linear_relu_tiled_kernel,
        out_shape=jax.ShapeDtypeStruct((B, N), out_dtype),
        grid_spec=pltpu.PrefetchScalarGridSpec(
            num_scalar_prefetch=0,
            grid=grid,
            in_specs=[
                pl.BlockSpec((tm, tk), lambda i, j, k: (i, k)),  # x tile
                pl.BlockSpec((tk, tn), lambda i, j, k: (k, j)),  # weight tile (K,N)
                pl.BlockSpec((1, tn), lambda i, j, k: (0, j)),   # bias tile
            ],
            out_specs=pl.BlockSpec((tm, tn), lambda i, j, k: (i, j)),
            scratch_shapes=[pltpu.VMEM((tm, tn), jnp.float32)],
        ),
        compiler_params=pltpu.CompilerParams(
            dimension_semantics=("parallel", "parallel", "arbitrary"),
            vmem_limit_bytes=vmem_limit,
        ),
        cost_estimate=cost,
    )(x, weight_t, bias2)


def init_generic_processor_params(key, input_dim, emb_dim):
    """Deterministic init matching nn.Linear's default U(-1/sqrt(in), 1/sqrt(in))."""
    kw, kb = jax.random.split(key)
    bound = 1.0 / jnp.sqrt(jnp.float32(input_dim))
    weight = jax.random.uniform(
        kw, (emb_dim, input_dim), jnp.float32, minval=-bound, maxval=bound
    )
    bias = jax.random.uniform(
        kb, (emb_dim,), jnp.float32, minval=-bound, maxval=bound
    )
    return weight, bias


if __name__ == "__main__":
    key = jax.random.PRNGKey(0)
    k1, k2, k3, k4, k5, k6 = jax.random.split(key, 6)

    # Case 1: small, module-typical shapes with f32 matmul operands (strict
    # tolerance).  Exercises the resident-weight 1-D-grid fast path.
    B0, K0, N0 = 8, 16, 32
    x0 = jax.random.normal(k1, (B0, K0), jnp.float32)
    w0, b0 = init_generic_processor_params(k2, K0, N0)
    w0_t, b0_2 = prepare_generic_processor_params(w0, b0, compute_dtype=jnp.float32)
    out0 = jax.block_until_ready(generic_processor_forward(x0, w0_t, b0_2))
    ref0 = jnp.maximum(x0 @ w0.T + b0, 0.0)
    assert out0.shape == (B0, N0)
    assert jnp.allclose(out0, ref0, atol=1e-5, rtol=1e-5), "case1 mismatch"

    # Case 2: resident fast path with default bf16 matmul operands (cast
    # in-kernel) and the megacore-friendly batch split (grid extent 2 over B).
    B1, K1, N1 = 512, 384, 256
    x1 = jax.random.normal(k3, (B1, K1), jnp.float32)
    w1, b1 = init_generic_processor_params(k4, K1, N1)
    w1_t, b1_2 = prepare_generic_processor_params(w1, b1)  # bf16 default
    out1 = jax.block_until_ready(generic_processor_forward(x1, w1_t, b1_2))
    ref1 = jnp.maximum(x1 @ w1.T + b1, 0.0)
    assert out1.shape == (B1, N1)
    assert jnp.allclose(out1, ref1, atol=3e-2, rtol=3e-2), "case2 mismatch"

    # Case 3: forced tiled (M, N, K) grid (partial final batch tile, multi-step
    # K reduction through the f32 accumulator), bf16 matmul operands.
    B2, K2, N2 = 1040, 1024, 512
    x2 = jax.random.normal(k5, (B2, K2), jnp.float32)
    w2, b2 = init_generic_processor_params(k6, K2, N2)
    w2_t, b2_2 = prepare_generic_processor_params(w2, b2)
    out2 = jax.block_until_ready(
        generic_processor_forward(
            x2, w2_t, b2_2, block_b=256, block_n=256, block_k=256
        )
    )
    ref2 = jnp.maximum(x2 @ w2.T + b2, 0.0)
    assert out2.shape == (B2, N2)
    assert jnp.allclose(out2, ref2, atol=5e-2, rtol=5e-2), "case3 mismatch"

    print("KERNEL_OK")
</pallas_src>

<mosaic_0001>
module attributes {stable_mosaic.version = 11 : i64} {
  func.func @_linear_relu_resident_kernel(%arg0: i32, %arg1: memref<8x16xf32, #tpu.memory_space<vmem>>, %arg2: memref<16x32xf32, #tpu.memory_space<vmem>>, %arg3: memref<1x32xf32, #tpu.memory_space<vmem>>, %arg4: memref<8x32xf32, #tpu.memory_space<vmem>>) attributes {dimension_semantics = [#tpu.dimension_semantics<parallel>], iteration_bounds = array<i64: 1>, scalar_prefetch = 0 : i64, scratch_operands = 0 : i64, tpu.core_type = #tpu.core_type<tc>, window_params = [{transform_indices = @transform_0, window_bounds = array<i64: 8, 16>}, {pipeline_mode = #tpu.pipeline_mode<synchronous>, transform_indices = @transform_1, window_bounds = array<i64: 16, 32>}, {pipeline_mode = #tpu.pipeline_mode<synchronous>, transform_indices = @transform_2, window_bounds = array<i64: 1, 32>}, {transform_indices = @transform_3, window_bounds = array<i64: 8, 32>}]} {
    %c0 = arith.constant 0 : index
    %c0_0 = arith.constant 0 : index
    %0 = vector.load %arg1[%c0, %c0_0] : memref<8x16xf32, #tpu.memory_space<vmem>>, vector<8x16xf32>
    %c0_1 = arith.constant 0 : index
    %c0_2 = arith.constant 0 : index
    %1 = vector.load %arg2[%c0_1, %c0_2] : memref<16x32xf32, #tpu.memory_space<vmem>>, vector<16x32xf32>
    %cst = arith.constant dense<0.000000e+00> : vector<8x32xf32>
    %2 = tpu.matmul %0, %1, %cst {dimension_numbers = #tpu.dot_dimension_numbers<[1], [0], [0], [1], [0, 0, 1, 1], [], []>} : vector<8x16xf32>, vector<16x32xf32>, vector<8x32xf32> -> vector<8x32xf32>
    %c0_3 = arith.constant 0 : index
    %c0_4 = arith.constant 0 : index
    %3 = vector.load %arg3[%c0_3, %c0_4] : memref<1x32xf32, #tpu.memory_space<vmem>>, vector<1x32xf32>
    %4 = vector.broadcast %3 : vector<1x32xf32> to vector<8x32xf32>
    %5 = arith.addf %2, %4 : vector<8x32xf32>
    %cst_5 = arith.constant 0.000000e+00 : f32
    %6 = vector.broadcast %cst_5 : f32 to vector<8x32xf32>
    %7 = arith.maximumf %5, %6 : vector<8x32xf32>
    %c0_6 = arith.constant 0 : index
    %c0_7 = arith.constant 0 : index
    %8 = vector.load %arg4[%c0_6, %c0_7] : memref<8x32xf32, #tpu.memory_space<vmem>>, vector<8x32xf32>
    tpu.vector_store %arg4[%c0_6, %c0_7], %7 {strides = array<i32>} : memref<8x32xf32, #tpu.memory_space<vmem>>, vector<8x32xf32>,
    return
  }
  func.func @transform_0(%arg0: i32) -> (i32, i32) {
    %c0_i32 = arith.constant 0 : i32
    %c0_i32_0 = arith.constant 0 : i32
    return %arg0, %c0_i32 : i32, i32
  }
  func.func @transform_1(%arg0: i32) -> (i32, i32) {
    %c0_i32 = arith.constant 0 : i32
    %c0_i32_0 = arith.constant 0 : i32
    %c0_i32_1 = arith.constant 0 : i32
    return %c0_i32, %c0_i32_0 : i32, i32
  }
  func.func @transform_2(%arg0: i32) -> (i32, i32) {
    %c0_i32 = arith.constant 0 : i32
    %c0_i32_0 = arith.constant 0 : i32
    %c0_i32_1 = arith.constant 0 : i32
    return %c0_i32, %c0_i32_0 : i32, i32
  }
  func.func @transform_3(%arg0: i32) -> (i32, i32) {
    %c0_i32 = arith.constant 0 : i32
    %c0_i32_0 = arith.constant 0 : i32
    return %arg0, %c0_i32 : i32, i32
  }
}

</mosaic_0001>

<llo_original>
// kernel: generic_processor_forward.1
$region0: #{generic_processor_forward.1}
  #allocation0 [shape = 'u32[]', space=smem, size = 0x4, offset = 0x4, fixed_abs, tag = 'smem constant byte address 0x4 - core index']
  #allocation1 [shape = 'u32[144,128]{1,0:T(1,128)}', space=vmem, size = 0x12000, scoped, tag = 'internal scratch']
  %s0 = inlined_call_operand.hbm [shape: f32[8,16], index: 0, kind: input, shape index: {}]
  %s1 = inlined_call_operand.hbm [shape: f32[16,32], index: 1, kind: input, shape index: {}]
  %s2 = inlined_call_operand.vmem [shape: f32[1,32], index: 2, kind: input, shape index: {}]
  %s3 = inlined_call_operand.hbm [shape: f32[8,32], index: 3, kind: output, shape index: {}]
  %s4 = sld [smem:[#allocation0]]
  $region30: #{generic_processor_forward.1} parent=0
    _
  %s6 = ssub.s32 1, %s4
  %s7 = scalar_select 0, %s6, %s4
  $region1: #{generic_processor_forward.1} parent=0
    #allocation2 [shape = 'u8[4096]{0}', space=vmem, size = 0x1000, scoped, tag = 'input window, operand 0, single buffered']
    #allocation3 [shape = 's32[1]{0}', space=sflag, size = 0x4, scoped, tag = 'scoped memory for generic_processor_forward.1']
    #allocation4 [shape = 's32[1]{0}', space=sflag, size = 0x4, scoped, tag = 'scoped memory for generic_processor_forward.1']
    #allocation5 [shape = 'u8[8192]{0}', space=vmem, size = 0x2000, scoped, tag = 'input window, operand 1, single buffered']
    #allocation6 [shape = 's32[1]{0}', space=sflag, size = 0x4, scoped, tag = 'scoped memory for generic_processor_forward.1']
    #allocation7 [shape = 'u8[4096]{0}', space=vmem, size = 0x1000, scoped, tag = 'output window, operand 0, single buffered']
    %8 = vsyncpa [#allocation3], 0
    %9 = vsyncpa [#allocation6], 0
    %10 = vsyncpa [#allocation4], 0
    // Predicated region
    $region2: #{generic_processor_forward.1} parent=1 // pred_check
      _
    $region3: #{generic_processor_forward.1} parent=1 // pred_check_branch
      %12 = sbr.rel (0) target = $region5
    $region4: #{generic_processor_forward.1} parent=1 // pred_region
      %s14 = ssub.s32 128, 128
      %15 = vsyncadd [#allocation3], %s14
      %s17 = sshll.u32 [#allocation2], 4
      %s18 = int_to_ptr.vmem [resolvable:$true] %s17
      %20 = dma.hbm_to_vmem [thread:$0]  %s0, 128, %s18, [#allocation3]
    $region5: #{generic_processor_forward.1} parent=1 // pred_fallthru
      _
    // Predicated region
    $region6: #{generic_processor_forward.1} parent=1 // pred_check
      _
    $region7: #{generic_processor_forward.1} parent=1 // pred_check_branch
      %22 = sbr.rel (0) target = $region9
    $region8: #{generic_processor_forward.1} parent=1 // pred_region
      %s24 = ssub.s32 256, 256
      %25 = vsyncadd [#allocation6], %s24
      %s26 = sshll.u32 [#allocation5], 4
      %s27 = int_to_ptr.vmem [resolvable:$true] %s26
      %32 = dma.hbm_to_vmem [thread:$0]  %s1, 256, %s27, [#allocation6], 128, 128, 8
    $region9: #{generic_processor_forward.1} parent=1 // pred_fallthru
      _
    // Predicated region
    $region10: #{generic_processor_forward.1} parent=1 // pred_check
      _
    $region11: #{generic_processor_forward.1} parent=1 // pred_check_branch
      %34 = sbr.rel (0) target = $region13
    $region12: #{generic_processor_forward.1} parent=1 // pred_region
      _
    $region13: #{generic_processor_forward.1} parent=1 // pred_fallthru
      _
    // Predicated region
    $region14: #{generic_processor_forward.1} parent=1 // pred_check
      _
    $region15: #{generic_processor_forward.1} parent=1 // pred_check_branch
      %36 = sbr.rel (0) target = $region17
    $region16: #{generic_processor_forward.1} parent=1 // pred_region
      %37 = dma.done [#allocation3], 128
    $region17: #{generic_processor_forward.1} parent=1 // pred_fallthru
      _
    // Predicated region
    $region18: #{generic_processor_forward.1} parent=1 // pred_check
      _
    $region19: #{generic_processor_forward.1} parent=1 // pred_check_branch
      %39 = sbr.rel (0) target = $region21
    $region20: #{generic_processor_forward.1} parent=1 // pred_region
      %40 = dma.done [#allocation6], 256
    $region21: #{generic_processor_forward.1} parent=1 // pred_fallthru
      _
    %v41 = vld [vmem:[#allocation2] sm:$0xff]
    %v42 = vld [vmem:[#allocation5] sm:$0xff]
    %v43 = vld [vmem:[#allocation5 + $0x8] sm:$0xff]
    %v44 = vld [vmem:[%s2] sm:$0x1]
    %v46 = vlaneseq
    %v47 = vshrl.u32 %v46, 7
    %v48 = vsub.s32 0, %v47
    %v49 = vrot.slane %v44, %v48
    %vm51 = vcmask 130048
    %v53 = vsel %vm51, %v41, 0
    %55 = vmatprep.subr.mxu0 0.0
    %56 = vmatpush1.msra.mxu0 %v42
    %57 = vmatprep.subr.mxu0 0.0
    %58 = vmatpush1.msra.mxu0 %v43
    %59 = vmatprep.subr.mxu0 0.0
    %60 = vmatpush1.msra.mxu0 0.0
    %61 = vmatprep.subr.mxu0 0.0
    %62 = vmatpush1.msra.mxu0 0.0
    %63 = vmatprep.subr.mxu0 0.0
    %64 = vmatpush1.msra.mxu0 0.0
    %65 = vmatprep.subr.mxu0 0.0
    %66 = vmatpush1.msra.mxu0 0.0
    %67 = vmatprep.subr.mxu0 0.0
    %68 = vmatpush1.msra.mxu0 0.0
    %69 = vmatprep.subr.mxu0 0.0
    %70 = vmatpush1.msra.mxu0 0.0
    %71 = vmatprep.subr.mxu0 0.0
    %72 = vmatpush1.msra.mxu0 0.0
    %73 = vmatprep.subr.mxu0 0.0
    %74 = vmatpush1.msra.mxu0 0.0
    %75 = vmatprep.subr.mxu0 0.0
    %76 = vmatpush1.msra.mxu0 0.0
    %77 = vmatprep.subr.mxu0 0.0
    %78 = vmatpush1.msra.mxu0 0.0
    %79 = vmatprep.subr.mxu0 0.0
    %80 = vmatpush1.msra.mxu0 0.0
    %81 = vmatprep.subr.mxu0 0.0
    %82 = vmatpush1.msra.mxu0 0.0
    %83 = vmatprep.subr.mxu0 0.0
    %84 = vmatpush1.msra.mxu0 0.0
    %85 = vmatprep.subr.mxu0 0.0
    %86 = vmatpush1.msra.mxu0 0.0
    %87 = vmatprep.subr.mxu0 0.0
    %88 = vmatpush1.msra.mxu0 0.0
    %89 = vmatprep.subr.mxu0 0.0
    %90 = vmatpush1.msra.mxu0 0.0
    %91 = vmatprep.subr.mxu0 0.0
    %92 = vmatpush1.msra.mxu0 0.0
    %93 = vmatprep.subr.mxu0 0.0
    %94 = vmatpush1.msra.mxu0 0.0
    %95 = vmatprep.subr.mxu0 0.0
    %96 = vmatpush1.msra.mxu0 0.0
    %97 = vmatprep.subr.mxu0 0.0
    %98 = vmatpush1.msra.mxu0 0.0
    %99 = vmatprep.subr.mxu0 0.0
    %100 = vmatpush1.msra.mxu0 0.0
    %101 = vmatprep.subr.mxu0 0.0
    %102 = vmatpush1.msra.mxu0 0.0
    %103 = vmatprep.subr.mxu0 0.0
    %104 = vmatpush1.msra.mxu0 0.0
    %105 = vmatprep.subr.mxu0 0.0
    %106 = vmatpush1.msra.mxu0 0.0
    %107 = vmatprep.subr.mxu0 0.0
    %108 = vmatpush1.msra.mxu0 0.0
    %109 = vmatprep.subr.mxu0 0.0
    %110 = vmatpush1.msra.mxu0 0.0
    %111 = vmatprep.subr.mxu0 0.0
    %112 = vmatpush1.msra.mxu0 0.0
    %113 = vmatprep.subr.mxu0 0.0
    %114 = vmatpush1.msra.mxu0 0.0
    %115 = vmatprep.subr.mxu0 0.0
    %116 = vmatpush1.msra.mxu0 0.0
    %117 = vmatprep.subr.mxu0 0.0
    %118 = vmatpush1.msra.mxu0 0.0
    %119 = vmatprep.mubr.f32.mxu0 0.0
    %120 = vmatmul.mubr.f32.gmra.mrb[0].mxu0 %v53
    %v121 = vpop.f32.mrb[0].mxu0
    %v122 = vadd.f32 %v49, %v121
    %v123 = vpop.f32.mrb[0].mxu0
    %124 = vdwg.mxu0
    %v125 = vmax.f32 %v122, 0.0
    %vm126 = vcmask 261120
    %127 = vst.msk [vmem:[#allocation7] sm:$0xff] %vm126, %v125
    // Predicated region
    $region22: #{generic_processor_forward.1} parent=1 // pred_check
      _
    $region23: #{generic_processor_forward.1} parent=1 // pred_check_branch
      %129 = sbr.rel (0) target = $region25
    $region24: #{generic_processor_forward.1} parent=1 // pred_region
      %s131 = ssub.s32 128, 128
      %132 = vsyncadd [#allocation4], %s131
      %s134 = sshll.u32 [#allocation7], 4
      %s135 = int_to_ptr.vmem [resolvable:$true] %s134
      %137 = dma.vmem_to_hbm [thread:$0]  %s135, 128, %s3, [#allocation4]
    $region25: #{generic_processor_forward.1} parent=1 // pred_fallthru
      _
    // Predicated region
    $region26: #{generic_processor_forward.1} parent=1 // pred_check
      _
    $region27: #{generic_processor_forward.1} parent=1 // pred_check_branch
      %139 = sbr.rel (0) target = $region29
    $region28: #{generic_processor_forward.1} parent=1 // pred_region
      %140 = dma.done [#allocation4], 128
    $region29: #{generic_processor_forward.1} parent=1 // pred_fallthru
      _
    %141 = vsyncpa [#allocation3], 1
    %142 = vsyncpa [#allocation6], 1
    %143 = vsyncpa [#allocation4], 1

</llo_original>
